<compile_context>
chip_gen: v5e
topology: v5e:2x2
jax: 0.10.0
libtpu: 0.0.40
codegen_flags: <defaults>
</compile_context>

<pallas_src>
import functools

import jax
import jax.numpy as jnp
from jax.experimental import pallas as pl
from jax.experimental.pallas import tpu as pltpu

DELTA = 1.0  # the original module references a global DELTA; pick 1.0 here.


def _round_up(a, b):
    return (a + b - 1) // b * b


def _make_conv_kernel(KH, KW, dilation, wpitch, wv, tail, cout):
    """Build the per-tile kernel with all geometry baked in as static Python ints."""
    # Flat-spatial shift for kernel tap (kh, kw): d = kh*dil*wpitch + kw*dil.
    offs = [(kh * dilation) * wpitch + (kw * dilation) for kh in range(KH) for kw in range(KW)]

    def kernel(w_ref, b_ref, x_ref, o_ref):
        # w_ref: (KH*KW, Cout, Cin)  VMEM-resident across the grid
        # b_ref: (Cout, 1)           VMEM-resident
        # x_ref: (Cin, TN*L)         streamed (double-buffered) -- one HBM read of x total
        # o_ref: (Cout, TN*L)        lane-dense output tile
        acc = jnp.dot(w_ref[0], x_ref[:, offs[0]:offs[0] + wv],
                      preferred_element_type=jnp.float32)
        for kk in range(1, len(offs)):
            d = offs[kk]
            acc = acc + jnp.dot(w_ref[kk], x_ref[:, d:d + wv],
                                preferred_element_type=jnp.float32)
        b = b_ref[...]
        o_ref[:, :wv] = (acc + b).astype(o_ref.dtype)
        if tail > 0:
            # Junk columns (per-image raster tail) -- written deterministically, sliced
            # off in the wrapper.
            o_ref[:, wv:] = jnp.broadcast_to(b, (cout, tail)).astype(o_ref.dtype)

    return kernel


@functools.partial(jax.jit, static_argnames=("stride", "padding", "dilation"))
def trans_layer_rule6(x, weight_scaled, bias, delta, *, stride=1, padding=1, dilation=1):
    """x: (N, Cin, H, W) f32 NCHW.  weight_scaled: (Cout, Cin, KH, KW) == W * delta."""
    N, Cin, H, W = x.shape
    Cout, _, KH, KW = weight_scaled.shape
    if stride != 1:
        # TODO(synk): stride>1 needs strided lane reads (or an im2col fallback); the
        # flat-spatial shift trick below assumes stride == 1.
        raise NotImplementedError("Pallas path implemented for stride=1 only")

    Hpad, Wpad = H + 2 * padding, W + 2 * padding
    Hout = Hpad - dilation * (KH - 1)
    Wout = Wpad - dilation * (KW - 1)
    wpitch = Wpad                                   # row pitch of the flat-spatial layout
    d_max = (KH - 1) * dilation * wpitch + (KW - 1) * dilation
    # Per-image flat length: padded image + small tail so shifted reads of valid outputs
    # never leave the image segment; rounded to 128 for lane-dense, blockable tiles.
    L = _round_up(Hpad * wpitch + (KW - 1) * dilation, 128)

    # Exact fold: ((conv(x, W*delta)+b) - b)/delta + b == conv(x, (W*delta)/delta) + b.
    # (delta ~ U(-DELTA, DELTA); a near-zero delta would blow up 1/delta -- the harness
    # nudges it away from 0, matching what the PyTorch forward needs anyway.)
    w_eff = (weight_scaled.astype(jnp.float32) / delta)          # (Cout, Cin, KH, KW)
    w_eff = jnp.transpose(w_eff, (2, 3, 0, 1)).reshape(KH * KW, Cout, Cin)
    b_col = bias.reshape(Cout, 1).astype(jnp.float32)

    # Channel-major, padded, flat-spatial input: (Cin, N*L).  ~1x input traffic (one
    # pad/transpose copy), instead of the old 9x-duplicated im2col + transpose + pad.
    xp = jnp.pad(jnp.transpose(x.astype(jnp.float32), (1, 0, 2, 3)),
                 ((0, 0), (0, 0), (padding, padding), (padding, padding)))
    xpf = jnp.pad(xp.reshape(Cin, N, Hpad * wpitch),
                  ((0, 0), (0, 0), (0, L - Hpad * wpitch))).reshape(Cin, N * L)

    # --- tile selection: bytes-based, VMEM-aware, >=2 grid steps when N>=2 (megacore) ---
    try:
        vmem_cap = int(pltpu.get_tpu_info().vmem_capacity_bytes)
    except Exception:
        vmem_cap = 64 * 1024 * 1024                  # conservative (v7x-sized) fallback
    budget = int(vmem_cap * 0.45)
    per_batch = (2 * Cin + 3 * Cout) * L * 4         # dbl-buf x + dbl-buf out + f32 acc
    target_stream = 4 * 1024 * 1024                  # ~4 MiB streamed X per grid step
    tn_cap = max(1, min(N,
                        budget // max(per_batch, 1),
                        max(1, target_stream // max(Cin * L * 4, 1))))
    if N >= 2:
        tn_cap = max(1, min(tn_cap, N // 2))         # keep both v7x TensorCores busy
    TN = max(d for d in range(1, tn_cap + 1) if N % d == 0)
    grid = (N // TN,)
    blk = TN * L
    Wv = blk - d_max                                 # widest shift-safe accumulate width
    tail = blk - Wv

    needed = per_batch * TN + (KH * KW * Cout * Cin + Cout) * 4 + (4 << 20)
    vmem_limit = int(min(vmem_cap * 0.9, max(needed, 32 * 1024 * 1024)))

    M = N * Hout * Wout
    K = Cin * KH * KW
    cost = pl.CostEstimate(
        flops=2 * M * K * Cout,
        transcendentals=0,
        bytes_accessed=4 * (Cin * N * L + Cout * N * L + KH * KW * Cout * Cin + Cout),
    )

    # TODO(synk): very large Cin (Cin*L per image no longer VMEM-resident, e.g. Cin>=1024
    # with big images on v7x) needs an extra "arbitrary" Cin-reduction grid axis with an
    # f32 VMEM accumulator; not needed for these shapes.
    kernel = _make_conv_kernel(KH, KW, dilation, wpitch, Wv, tail, Cout)
    out_flat = pl.pallas_call(
        kernel,
        out_shape=jax.ShapeDtypeStruct((Cout, N * L), jnp.float32),
        grid=grid,
        in_specs=[
            pl.BlockSpec((KH * KW, Cout, Cin), lambda i: (0, 0, 0)),  # weights: resident
            pl.BlockSpec((Cout, 1), lambda i: (0, 0)),                # bias:    resident
            pl.BlockSpec((Cin, blk), lambda i: (0, i)),               # x: streamed tiles
        ],
        out_specs=pl.BlockSpec((Cout, blk), lambda i: (0, i)),
        compiler_params=pltpu.CompilerParams(
            dimension_semantics=("parallel",),       # batch blocks are independent
            vmem_limit_bytes=vmem_limit,
        ),
        cost_estimate=cost,
    )(w_eff, b_col, xpf)

    # Un-flatten: drop per-image tail and per-row junk columns, back to NCHW.
    out = out_flat.reshape(Cout, N, L)[:, :, :Hout * wpitch]
    out = out.reshape(Cout, N, Hout, wpitch)[:, :, :, :Wout]
    return jnp.transpose(out, (1, 0, 2, 3))          # (N, Cout, Hout, Wout)


if __name__ == "__main__":
    key = jax.random.PRNGKey(0)
    k_x, k_w, k_b, k_d = jax.random.split(key, 4)

    # small shapes consistent with a Conv2d(4 -> 8, 3x3, stride=1, pad=1)
    N, Cin, H, W = 2, 4, 16, 16
    Cout, KH, KW = 8, 3, 3

    x = jax.random.normal(k_x, (N, Cin, H, W), dtype=jnp.float32)
    weight = jax.random.normal(k_w, (Cout, Cin, KH, KW), dtype=jnp.float32) * 0.1
    bias = jax.random.normal(k_b, (Cout,), dtype=jnp.float32) * 0.1
    # delta ~ Uniform(-DELTA, DELTA); nudge away from 0 to keep the division sane
    delta = jax.random.uniform(k_d, (), minval=-DELTA, maxval=DELTA, dtype=jnp.float32)
    delta = jnp.where(jnp.abs(delta) < 1e-3, jnp.float32(0.5), delta)

    # module __init__ scales the stored conv weight by delta
    weight_scaled = weight * delta

    out = trans_layer_rule6(x, weight_scaled, bias, delta, stride=1, padding=1)
    out = jax.block_until_ready(out)

    # reference: exact module arithmetic (conv with scaled weight, then (y-b)/delta + b)
    y_ref = jax.lax.conv_general_dilated(
        x, weight_scaled, window_strides=(1, 1), padding=((1, 1), (1, 1)),
        dimension_numbers=("NCHW", "OIHW", "NCHW"),
    ) + bias.reshape(1, Cout, 1, 1)
    ref = (y_ref - bias.reshape(1, Cout, 1, 1)) / delta + bias.reshape(1, Cout, 1, 1)

    assert out.shape == (N, Cout, H, W)
    assert jnp.allclose(out, ref, atol=1e-4, rtol=1e-4), float(jnp.max(jnp.abs(out - ref)))
    print("KERNEL_OK")
</pallas_src>

<mosaic_0001>
module attributes {stable_mosaic.version = 11 : i64} {
  func.func @kernel(%arg0: i32, %arg1: memref<9x8x4xf32, #tpu.memory_space<vmem>>, %arg2: memref<8x1xf32, #tpu.memory_space<vmem>>, %arg3: memref<4x384xf32, #tpu.memory_space<vmem>>, %arg4: memref<8x384xf32, #tpu.memory_space<vmem>>) attributes {dimension_semantics = [#tpu.dimension_semantics<parallel>], iteration_bounds = array<i64: 2>, scalar_prefetch = 0 : i64, scratch_operands = 0 : i64, tpu.core_type = #tpu.core_type<tc>, window_params = [{pipeline_mode = #tpu.pipeline_mode<synchronous>, transform_indices = @transform_0, window_bounds = array<i64: 9, 8, 4>}, {pipeline_mode = #tpu.pipeline_mode<synchronous>, transform_indices = @transform_1, window_bounds = array<i64: 8, 1>}, {transform_indices = @transform_2, window_bounds = array<i64: 4, 384>}, {transform_indices = @transform_3, window_bounds = array<i64: 8, 384>}]} {
    %c0 = arith.constant 0 : index
    %c0_0 = arith.constant 0 : index
    %c0_1 = arith.constant 0 : index
    %0 = vector.load %arg1[%c0, %c0_0, %c0_1] : memref<9x8x4xf32, #tpu.memory_space<vmem>>, vector<1x8x4xf32>
    %1 = vector.shape_cast %0 : vector<1x8x4xf32> to vector<8x4xf32>
    %c0_2 = arith.constant 0 : index
    %c0_3 = arith.constant 0 : index
    %2 = vector.load %arg3[%c0_2, %c0_3] : memref<4x384xf32, #tpu.memory_space<vmem>>, vector<4x346xf32>
    %cst = arith.constant dense<0.000000e+00> : vector<8x346xf32>
    %3 = tpu.matmul %1, %2, %cst {dimension_numbers = #tpu.dot_dimension_numbers<[1], [0], [0], [1], [0, 0, 1, 1], [], []>} : vector<8x4xf32>, vector<4x346xf32>, vector<8x346xf32> -> vector<8x346xf32>
    %c1 = arith.constant 1 : index
    %c0_4 = arith.constant 0 : index
    %c0_5 = arith.constant 0 : index
    %4 = vector.load %arg1[%c1, %c0_4, %c0_5] : memref<9x8x4xf32, #tpu.memory_space<vmem>>, vector<1x8x4xf32>
    %5 = vector.shape_cast %4 : vector<1x8x4xf32> to vector<8x4xf32>
    %c0_6 = arith.constant 0 : index
    %c1_7 = arith.constant 1 : index
    %6 = vector.load %arg3[%c0_6, %c1_7] : memref<4x384xf32, #tpu.memory_space<vmem>>, vector<4x346xf32>
    %cst_8 = arith.constant dense<0.000000e+00> : vector<8x346xf32>
    %7 = tpu.matmul %5, %6, %cst_8 {dimension_numbers = #tpu.dot_dimension_numbers<[1], [0], [0], [1], [0, 0, 1, 1], [], []>} : vector<8x4xf32>, vector<4x346xf32>, vector<8x346xf32> -> vector<8x346xf32>
    %8 = arith.addf %3, %7 : vector<8x346xf32>
    %c2 = arith.constant 2 : index
    %c0_9 = arith.constant 0 : index
    %c0_10 = arith.constant 0 : index
    %9 = vector.load %arg1[%c2, %c0_9, %c0_10] : memref<9x8x4xf32, #tpu.memory_space<vmem>>, vector<1x8x4xf32>
    %10 = vector.shape_cast %9 : vector<1x8x4xf32> to vector<8x4xf32>
    %c0_11 = arith.constant 0 : index
    %c2_12 = arith.constant 2 : index
    %11 = vector.load %arg3[%c0_11, %c2_12] : memref<4x384xf32, #tpu.memory_space<vmem>>, vector<4x346xf32>
    %cst_13 = arith.constant dense<0.000000e+00> : vector<8x346xf32>
    %12 = tpu.matmul %10, %11, %cst_13 {dimension_numbers = #tpu.dot_dimension_numbers<[1], [0], [0], [1], [0, 0, 1, 1], [], []>} : vector<8x4xf32>, vector<4x346xf32>, vector<8x346xf32> -> vector<8x346xf32>
    %13 = arith.addf %8, %12 : vector<8x346xf32>
    %c3 = arith.constant 3 : index
    %c0_14 = arith.constant 0 : index
    %c0_15 = arith.constant 0 : index
    %14 = vector.load %arg1[%c3, %c0_14, %c0_15] : memref<9x8x4xf32, #tpu.memory_space<vmem>>, vector<1x8x4xf32>
    %15 = vector.shape_cast %14 : vector<1x8x4xf32> to vector<8x4xf32>
    %c0_16 = arith.constant 0 : index
    %c18 = arith.constant 18 : index
    %16 = vector.load %arg3[%c0_16, %c18] : memref<4x384xf32, #tpu.memory_space<vmem>>, vector<4x346xf32>
    %cst_17 = arith.constant dense<0.000000e+00> : vector<8x346xf32>
    %17 = tpu.matmul %15, %16, %cst_17 {dimension_numbers = #tpu.dot_dimension_numbers<[1], [0], [0], [1], [0, 0, 1, 1], [], []>} : vector<8x4xf32>, vector<4x346xf32>, vector<8x346xf32> -> vector<8x346xf32>
    %18 = arith.addf %13, %17 : vector<8x346xf32>
    %c4 = arith.constant 4 : index
    %c0_18 = arith.constant 0 : index
    %c0_19 = arith.constant 0 : index
    %19 = vector.load %arg1[%c4, %c0_18, %c0_19] : memref<9x8x4xf32, #tpu.memory_space<vmem>>, vector<1x8x4xf32>
    %20 = vector.shape_cast %19 : vector<1x8x4xf32> to vector<8x4xf32>
    %c0_20 = arith.constant 0 : index
    %c19 = arith.constant 19 : index
    %21 = vector.load %arg3[%c0_20, %c19] : memref<4x384xf32, #tpu.memory_space<vmem>>, vector<4x346xf32>
    %cst_21 = arith.constant dense<0.000000e+00> : vector<8x346xf32>
    %22 = tpu.matmul %20, %21, %cst_21 {dimension_numbers = #tpu.dot_dimension_numbers<[1], [0], [0], [1], [0, 0, 1, 1], [], []>} : vector<8x4xf32>, vector<4x346xf32>, vector<8x346xf32> -> vector<8x346xf32>
    %23 = arith.addf %18, %22 : vector<8x346xf32>
    %c5 = arith.constant 5 : index
    %c0_22 = arith.constant 0 : index
    %c0_23 = arith.constant 0 : index
    %24 = vector.load %arg1[%c5, %c0_22, %c0_23] : memref<9x8x4xf32, #tpu.memory_space<vmem>>, vector<1x8x4xf32>
    %25 = vector.shape_cast %24 : vector<1x8x4xf32> to vector<8x4xf32>
    %c0_24 = arith.constant 0 : index
    %c20 = arith.constant 20 : index
    %26 = vector.load %arg3[%c0_24, %c20] : memref<4x384xf32, #tpu.memory_space<vmem>>, vector<4x346xf32>
    %cst_25 = arith.constant dense<0.000000e+00> : vector<8x346xf32>
    %27 = tpu.matmul %25, %26, %cst_25 {dimension_numbers = #tpu.dot_dimension_numbers<[1], [0], [0], [1], [0, 0, 1, 1], [], []>} : vector<8x4xf32>, vector<4x346xf32>, vector<8x346xf32> -> vector<8x346xf32>
    %28 = arith.addf %23, %27 : vector<8x346xf32>
    %c6 = arith.constant 6 : index
    %c0_26 = arith.constant 0 : index
    %c0_27 = arith.constant 0 : index
    %29 = vector.load %arg1[%c6, %c0_26, %c0_27] : memref<9x8x4xf32, #tpu.memory_space<vmem>>, vector<1x8x4xf32>
    %30 = vector.shape_cast %29 : vector<1x8x4xf32> to vector<8x4xf32>
    %c0_28 = arith.constant 0 : index
    %c36 = arith.constant 36 : index
    %31 = vector.load %arg3[%c0_28, %c36] : memref<4x384xf32, #tpu.memory_space<vmem>>, vector<4x346xf32>
    %cst_29 = arith.constant dense<0.000000e+00> : vector<8x346xf32>
    %32 = tpu.matmul %30, %31, %cst_29 {dimension_numbers = #tpu.dot_dimension_numbers<[1], [0], [0], [1], [0, 0, 1, 1], [], []>} : vector<8x4xf32>, vector<4x346xf32>, vector<8x346xf32> -> vector<8x346xf32>
    %33 = arith.addf %28, %32 : vector<8x346xf32>
    %c7 = arith.constant 7 : index
    %c0_30 = arith.constant 0 : index
    %c0_31 = arith.constant 0 : index
    %34 = vector.load %arg1[%c7, %c0_30, %c0_31] : memref<9x8x4xf32, #tpu.memory_space<vmem>>, vector<1x8x4xf32>
    %35 = vector.shape_cast %34 : vector<1x8x4xf32> to vector<8x4xf32>
    %c0_32 = arith.constant 0 : index
    %c37 = arith.constant 37 : index
    %36 = vector.load %arg3[%c0_32, %c37] : memref<4x384xf32, #tpu.memory_space<vmem>>, vector<4x346xf32>
    %cst_33 = arith.constant dense<0.000000e+00> : vector<8x346xf32>
    %37 = tpu.matmul %35, %36, %cst_33 {dimension_numbers = #tpu.dot_dimension_numbers<[1], [0], [0], [1], [0, 0, 1, 1], [], []>} : vector<8x4xf32>, vector<4x346xf32>, vector<8x346xf32> -> vector<8x346xf32>
    %38 = arith.addf %33, %37 : vector<8x346xf32>
    %c8 = arith.constant 8 : index
    %c0_34 = arith.constant 0 : index
    %c0_35 = arith.constant 0 : index
    %39 = vector.load %arg1[%c8, %c0_34, %c0_35] : memref<9x8x4xf32, #tpu.memory_space<vmem>>, vector<1x8x4xf32>
    %40 = vector.shape_cast %39 : vector<1x8x4xf32> to vector<8x4xf32>
    %c0_36 = arith.constant 0 : index
    %c38 = arith.constant 38 : index
    %41 = vector.load %arg3[%c0_36, %c38] : memref<4x384xf32, #tpu.memory_space<vmem>>, vector<4x346xf32>
    %cst_37 = arith.constant dense<0.000000e+00> : vector<8x346xf32>
    %42 = tpu.matmul %40, %41, %cst_37 {dimension_numbers = #tpu.dot_dimension_numbers<[1], [0], [0], [1], [0, 0, 1, 1], [], []>} : vector<8x4xf32>, vector<4x346xf32>, vector<8x346xf32> -> vector<8x346xf32>
    %43 = arith.addf %38, %42 : vector<8x346xf32>
    %c0_38 = arith.constant 0 : index
    %c0_39 = arith.constant 0 : index
    %44 = vector.load %arg2[%c0_38, %c0_39] : memref<8x1xf32, #tpu.memory_space<vmem>>, vector<8x1xf32>
    %45 = vector.broadcast %44 : vector<8x1xf32> to vector<8x346xf32>
    %46 = arith.addf %43, %45 : vector<8x346xf32>
    %c0_40 = arith.constant 0 : index
    %c0_41 = arith.constant 0 : index
    %47 = vector.load %arg4[%c0_40, %c0_41] : memref<8x384xf32, #tpu.memory_space<vmem>>, vector<8x346xf32>
    tpu.vector_store %arg4[%c0_40, %c0_41], %46 {strides = array<i32>} : memref<8x384xf32, #tpu.memory_space<vmem>>, vector<8x346xf32>,
    %48 = vector.shape_cast %44 : vector<8x1xf32> to vector<8x1xf32>
    %49 = vector.broadcast %48 : vector<8x1xf32> to vector<8x38xf32>
    %c0_42 = arith.constant 0 : index
    %c346 = arith.constant 346 : index
    %50 = vector.load %arg4[%c0_42, %c346] : memref<8x384xf32, #tpu.memory_space<vmem>>, vector<8x38xf32>
    tpu.vector_store %arg4[%c0_42, %c346], %49 {strides = array<i32>} : memref<8x384xf32, #tpu.memory_space<vmem>>, vector<8x38xf32>,
    return
  }
  func.func @transform_0(%arg0: i32) -> (i32, i32, i32) {
    %c0_i32 = arith.constant 0 : i32
    %c0_i32_0 = arith.constant 0 : i32
    %c0_i32_1 = arith.constant 0 : i32
    %c0_i32_2 = arith.constant 0 : i32
    return %c0_i32, %c0_i32_0, %c0_i32_1 : i32, i32, i32
  }
  func.func @transform_1(%arg0: i32) -> (i32, i32) {
    %c0_i32 = arith.constant 0 : i32
    %c0_i32_0 = arith.constant 0 : i32
    %c0_i32_1 = arith.constant 0 : i32
    return %c0_i32, %c0_i32_0 : i32, i32
  }
  func.func @transform_2(%arg0: i32) -> (i32, i32) {
    %c0_i32 = arith.constant 0 : i32
    %c0_i32_0 = arith.constant 0 : i32
    return %c0_i32, %arg0 : i32, i32
  }
  func.func @transform_3(%arg0: i32) -> (i32, i32) {
    %c0_i32 = arith.constant 0 : i32
    %c0_i32_0 = arith.constant 0 : i32
    return %c0_i32, %arg0 : i32, i32
  }
}

</mosaic_0001>

<llo_original>
// kernel: trans_layer_rule6.1
$region0: #{trans_layer_rule6.1}
  #allocation0 [shape = 'u32[]', space=smem, size = 0x4, offset = 0x4, fixed_abs, tag = 'smem constant byte address 0x4 - core index']
  #allocation1 [shape = 'u32[72,128]{1,0:T(1,128)}', space=vmem, size = 0x9000, scoped, tag = 'internal scratch']
  %s0 = inlined_call_operand.vmem [shape: f32[9,8,4], index: 0, kind: input, shape index: {}]
  %s1 = inlined_call_operand.vmem [shape: f32[8,1], index: 1, kind: input, shape index: {}]
  %s2 = inlined_call_operand.vmem [shape: f32[4,768], index: 2, kind: input, shape index: {}]
  %s3 = inlined_call_operand.vmem [shape: f32[8,768], index: 3, kind: output, shape index: {}]
  %s4 = sld [smem:[#allocation0]]
  $region45: #{trans_layer_rule6.1} parent=0
    _
  %s6 = ssub.s32 1, %s4
  %s7 = scalar_select 0, %s6, %s4
  loop: start=0, step=1, limit=4
  $region2: #{trans_layer_rule6.1} parent=0 // loop_pre_header
    _
  $region3: #{trans_layer_rule6.1} parent=0 // loop_header
    %s9 = sphi 0, %s13
    %p10 = scmp.ge.s32.totalorder %s9, 4
    %s17 = sphi 0, %s17
    %s19 = sphi 0, %s17
    %s20 = sphi 0, %s19
    %s34 = sphi 0, %s20
    %s38 = sphi 0, %s38
    %s40 = sphi 0, %s38
    %s41 = sphi 0, %s40
    %s55 = sphi 0, %s41
    %s61 = sphi 0, %s63
    %s64 = sphi 0, %s61
    %s65 = sphi 0, %s64
    %s81 = sphi 0, %s65
    %s87 = sphi 0, %s89
    %s90 = sphi 0, %s87
    %s91 = sphi 0, %s90
    %s107 = sphi 0, %s91
  $region4: #{trans_layer_rule6.1} parent=0 // loop_header_branch
    %12 = sbr.rel (%p10) target = $region8
  $region5: #{trans_layer_rule6.1} parent=0 // loop_body
    %s14 = ssub.s32 %s9, 1
    %s15 = ssub.s32 %s9, 2
    %s16 = sadd.s32 %s9, 1
    %s18 = sadd.s32 %s17, 1
    %p21 = scmp.eq.s32.totalorder %s9, 1
    %p22 = scmp.ne.s32.totalorder %s17, %s19
    %p23 = scmp.eq.s32.totalorder %s9, 0
    %p24 = por %p22, %p23
    %p25 = scmp.ne.s32.totalorder %s17, %s19
    %p26 = scmp.eq.s32.totalorder %s14, 1
    %p27 = por %p25, %p26
    %p28 = scmp.ne.s32.totalorder %s19, %s20
    %p29 = scmp.eq.s32.totalorder %s14, 0
    %p30 = por %p28, %p29
    %p31 = scmp.ne.s32.totalorder %s19, %s20
    %p32 = scmp.eq.s32.totalorder %s15, 1
    %p33 = por %p31, %p32
    %p35 = scmp.ne.s32.totalorder %s20, %s34
    %p36 = scmp.eq.s32.totalorder %s15, 0
    %p37 = por %p35, %p36
    %s39 = sadd.s32 %s38, 1
    %p42 = scmp.eq.s32.totalorder %s9, 1
    %p43 = scmp.ne.s32.totalorder %s38, %s40
    %p44 = scmp.eq.s32.totalorder %s9, 0
    %p45 = por %p43, %p44
    %p46 = scmp.ne.s32.totalorder %s38, %s40
    %p47 = scmp.eq.s32.totalorder %s14, 1
    %p48 = por %p46, %p47
    %p49 = scmp.ne.s32.totalorder %s40, %s41
    %p50 = scmp.eq.s32.totalorder %s14, 0
    %p51 = por %p49, %p50
    %p52 = scmp.ne.s32.totalorder %s40, %s41
    %p53 = scmp.eq.s32.totalorder %s15, 1
    %p54 = por %p52, %p53
    %p56 = scmp.ne.s32.totalorder %s41, %s55
    %p57 = scmp.eq.s32.totalorder %s15, 0
    %p58 = por %p56, %p57
    %s59 = ssub.s32 %s9, %s16
    %p60 = scmp.eq.s32.totalorder %s59, 0
    %s62 = sadd.s32 %s61, 1
    %s63 = scalar_select %p60, %s61, %s62
    %p66 = pneg %p60
    %p67 = scmp.eq.s32.totalorder %s9, 1
    %p68 = por %p66, %p67
    %p69 = scmp.ne.s32.totalorder %s61, %s64
    %p70 = scmp.eq.s32.totalorder %s9, 0
    %p71 = por %p69, %p70
    %p72 = scmp.ne.s32.totalorder %s61, %s64
    %p73 = scmp.eq.s32.totalorder %s14, 1
    %p74 = por %p72, %p73
    %p75 = scmp.ne.s32.totalorder %s64, %s65
    %p76 = scmp.eq.s32.totalorder %s14, 0
    %p77 = por %p75, %p76
    %p78 = scmp.ne.s32.totalorder %s64, %s65
    %p79 = scmp.eq.s32.totalorder %s15, 1
    %p80 = por %p78, %p79
    %p82 = scmp.ne.s32.totalorder %s65, %s81
    %p83 = scmp.eq.s32.totalorder %s15, 0
    %p84 = por %p82, %p83
    %s85 = ssub.s32 %s9, %s16
    %p86 = scmp.eq.s32.totalorder %s85, 0
    %s88 = sadd.s32 %s87, 1
    %s89 = scalar_select %p86, %s87, %s88
    %p92 = pneg %p86
    %p93 = scmp.eq.s32.totalorder %s9, 1
    %p94 = por %p92, %p93
    %p95 = scmp.ne.s32.totalorder %s87, %s90
    %p96 = scmp.eq.s32.totalorder %s9, 0
    %p97 = por %p95, %p96
    %p98 = scmp.ne.s32.totalorder %s87, %s90
    %p99 = scmp.eq.s32.totalorder %s14, 1
    %p100 = por %p98, %p99
    %p101 = scmp.ne.s32.totalorder %s90, %s91
    %p102 = scmp.eq.s32.totalorder %s14, 0
    %p103 = por %p101, %p102
    %p104 = scmp.ne.s32.totalorder %s90, %s91
    %p105 = scmp.eq.s32.totalorder %s15, 1
    %p106 = por %p104, %p105
    %p108 = scmp.ne.s32.totalorder %s91, %s107
    %p109 = scmp.eq.s32.totalorder %s15, 0
    %p110 = por %p108, %p109
    %p111 = scmp.le.s32.totalorder 1, %s9
    %p112 = scmp.lt.s32.totalorder %s9, 3
    %p113 = pnand %p111, %p112
    %p114 = pneg %p113
    // Predicated region
    $region9: #{trans_layer_rule6.1} parent=5 // pred_check
      _
    $region10: #{trans_layer_rule6.1} parent=5 // pred_check_branch
      %116 = sbr.rel (%p113) target = $region12
    $region11: #{trans_layer_rule6.1} parent=5 // pred_region
      %s117 = ssub.s32 %s9, 1
      // Predicated region
      $region13: #{trans_layer_rule6.1} parent=11 // pred_check
        %p118 = pneg %p30
      $region14: #{trans_layer_rule6.1} parent=11 // pred_check_branch
        %120 = sbr.rel (%p118) target = $region16
      $region15: #{trans_layer_rule6.1} parent=11 // pred_region
        _
      $region16: #{trans_layer_rule6.1} parent=11 // pred_fallthru
        _
      // Predicated region
      $region17: #{trans_layer_rule6.1} parent=11 // pred_check
        %p121 = pneg %p51
      $region18: #{trans_layer_rule6.1} parent=11 // pred_check_branch
        %123 = sbr.rel (%p121) target = $region20
      $region19: #{trans_layer_rule6.1} parent=11 // pred_region
        _
      $region20: #{trans_layer_rule6.1} parent=11 // pred_fallthru
        _
    $region12: #{trans_layer_rule6.1} parent=5 // pred_fallthru
      _
    %p124 = scmp.lt.s32.totalorder %s9, 2
    // Predicated region
    $region21: #{trans_layer_rule6.1} parent=5 // pred_check
      %p125 = pneg %p124
    $region22: #{trans_layer_rule6.1} parent=5 // pred_check_branch
      %127 = sbr.rel (%p125) target = $region24
    $region23: #{trans_layer_rule6.1} parent=5 // pred_region
      // Predicated region
      $region25: #{trans_layer_rule6.1} parent=23 // pred_check
        %p128 = pneg %p71
      $region26: #{trans_layer_rule6.1} parent=23 // pred_check_branch
        %130 = sbr.rel (%p128) target = $region28
      $region27: #{trans_layer_rule6.1} parent=23 // pred_region
        %s131 = smul.u32 3, %s9
        %p132 = scmp.lt.s32.totalorder %s131, 5
        %s133 = scalar_select %p132, %s131, 5
        %s134 = smul.addr %s133, 4
        %s135 = scalar_lea.vmem %s2, %s134
        %s136 = smul.u32 3, %s9
      $region28: #{trans_layer_rule6.1} parent=23 // pred_fallthru
        _
    $region24: #{trans_layer_rule6.1} parent=5 // pred_fallthru
      _
    %p137 = scmp.le.s32.totalorder 1, %s9
    %p138 = scmp.lt.s32.totalorder %s9, 3
    %p139 = pnand %p137, %p138
    %p140 = pneg %p139
    // Predicated region
    $region29: #{trans_layer_rule6.1} parent=5 // pred_check
      _
    $region30: #{trans_layer_rule6.1} parent=5 // pred_check_branch
      %142 = sbr.rel (%p139) target = $region32
    $region31: #{trans_layer_rule6.1} parent=5 // pred_region
      %s143 = ssub.s32 %s9, 1
      %p144 = pneg %p30
      %p145 = pneg %p27
      %p146 = pneg %p51
      %p147 = pneg %p48
      %s148 = smul.u32 3, %s14
      %p149 = scmp.lt.s32.totalorder %s148, 5
      %s150 = scalar_select %p149, %s148, 5
      %s151 = smul.addr %s150, 4
      %s152 = scalar_lea.vmem %s2, %s151
      %p153 = pneg %p77
      %p154 = pneg %p74
      %p155 = pneg %p103
      %p156 = pneg %p100
      %s157 = smul.u32 3, %s14
      %p158 = scmp.lt.s32.totalorder %s157, 5
      %s159 = scalar_select %p158, %s157, 5
      %s160 = smul.addr %s159, 8
      %s161 = scalar_lea.vmem %s3, %s160
      %s162 = smul.u32 3, %s14
      %p163 = scmp.lt.s32.totalorder %s162, 5
      %s164 = scalar_select %p163, %s162, 5
      %s165 = smul.addr %s164, 4
      %s166 = scalar_lea.vmem %s2, %s165
      %s167 = smul.u32 3, %s14
      %s168 = smul.u32 3, %s14
      %p169 = scmp.lt.s32.totalorder %s168, 5
      %s170 = scalar_select %p169, %s168, 5
      %s171 = smul.addr %s170, 8
      %s172 = scalar_lea.vmem %s3, %s171
      %s173 = smul.u32 3, %s14
      %v174 = vld [vmem:[%s0] sm:$0xff]
      %v175 = vld [vmem:[%s166] sm:$0xff]
      %v176 = vld [vmem:[%s166 + $0x8] sm:$0xf]
      %s177 = scalar_lea.vmem %s0, 8
      %v178 = vld [vmem:[%s177] sm:$0xff]
      %181 = vst [vmem:[#allocation1] ss:$2 sm:$0xff] %v175
      %s182 = scalar_lea.vmem [#allocation1], 16
      %183 = vst [vmem:[%s182] ss:$2 sm:$0xff] %v176
      %v184 = vld.sshfl [vmem:[#allocation1] sm:$0xff pattern:$0x75316420]
      %v185 = vld.sshfl [vmem:[#allocation1 + $0x8] sm:$0xff pattern:$0x75316420]
      %v186 = vld.sshfl [vmem:[#allocation1 + $0x10] sm:$0xff pattern:$0x75316420]
      %187 = vrot.lane.b32.xlu0 %v184, 127
      %v188 = vpop.permute.xlu0 %187
      %189 = vrot.lane.b32.xlu0 %v185, 127
      %v190 = vpop.permute.xlu0 %189
      %191 = vrot.lane.b32.xlu0 %v186, 127
      %v192 = vpop.permute.xlu0 %191
      %vm193 = vcmask 1039360
      %v194 = vsel %vm193, %v188, %v190
      %v195 = vsel %vm193, %v190, %v192
      %vm196 = vcmask 31744
      %v198 = vsel %vm196, %v178, 0
      %vm200 = vcmask 1043456
      %v201 = vsel %vm200, %v194, 0
      %v203 = vsel %vm200, %v195, 0
      %v205 = vsel %vm200, %v192, 0
      %207 = vmatpush.msra.mxu0 0.0
      %208 = vmatpush.msra.mxu0 0.0
      %209 = vmatpush.msra.mxu0 0.0
      %210 = vmatpush.msra.mxu0 0.0
      %211 = vmatpush.msra.mxu0 0.0
      %212 = vmatpush.msra.mxu0 0.0
      %213 = vmatpush.msra.mxu0 0.0
      %214 = vmatpush.msra.mxu0 0.0
      %215 = vmatpush.msra.mxu0 0.0
      %216 = vmatpush.msra.mxu0 0.0
      %217 = vmatpush.msra.mxu0 0.0
      %218 = vmatpush.msra.mxu0 0.0
      %219 = vmatpush.msra.mxu0 0.0
      %220 = vmatpush.msra.mxu0 0.0
      %221 = vmatpush.msra.mxu0 0.0
      %222 = vmatpush.msra.mxu0 %v201
      %223 = vmatmul.f32.gmra.mxu0 %v198
      %v224 = vpop.f32.mrf.mxu0
      %v225 = vadd.f32 0.0, %v224
      %226 = vdwg.mxu0
      %227 = vmatpush.msra.mxu0 0.0
      %228 = vmatpush.msra.mxu0 0.0
      %229 = vmatpush.msra.mxu0 0.0
      %230 = vmatpush.msra.mxu0 0.0
      %231 = vmatpush.msra.mxu0 0.0
      %232 = vmatpush.msra.mxu0 0.0
      %233 = vmatpush.msra.mxu0 0.0
      %234 = vmatpush.msra.mxu0 0.0
      %235 = vmatpush.msra.mxu0 0.0
      %236 = vmatpush.msra.mxu0 0.0
      %237 = vmatpush.msra.mxu0 0.0
      %238 = vmatpush.msra.mxu0 0.0
      %239 = vmatpush.msra.mxu0 0.0
      %240 = vmatpush.msra.mxu0 0.0
      %241 = vmatpush.msra.mxu0 0.0
      %242 = vmatpush.msra.mxu0 %v203
      %243 = vmatmul.f32.gmra.mxu0 %v198
      %v244 = vpop.f32.mrf.mxu0
      %v245 = vadd.f32 0.0, %v244
      %246 = vdwg.mxu0
      %247 = vmatpush.msra.mxu0 0.0
      %248 = vmatpush.msra.mxu0 0.0
      %249 = vmatpush.msra.mxu0 0.0
      %250 = vmatpush.msra.mxu0 0.0
      %251 = vmatpush.msra.mxu0 0.0
      %252 = vmatpush.msra.mxu0 0.0
      %253 = vmatpush.msra.mxu0 0.0
      %254 = vmatpush.msra.mxu0 0.0
      %255 = vmatpush.msra.mxu0 0.0
      %256 = vmatpush.msra.mxu0 0.0
      %257 = vmatpush.msra.mxu0 0.0
      %258 = vmatpush.msra.mxu0 0.0
      %259 = vmatpush.msra.mxu0 0.0
      %260 = vmatpush.msra.mxu0 0.0
      %261 = vmatpush.msra.mxu0 0.0
      %262 = vmatpush.msra.mxu0 %v205
      %263 = vmatmul.f32.gmra.mxu0 %v198
      %v264 = vpop.f32.mrf.mxu0
      %v265 = vadd.f32 0.0, %v264
      %266 = vdwg.mxu0
      %267 = vst [vmem:[#allocation1] ss:$2 sm:$0xff] %v175
      %s268 = scalar_lea.vmem [#allocation1], 16
      %269 = vst [vmem:[%s268] ss:$2 sm:$0xff] %v176
      %v270 = vld.sshfl [vmem:[#allocation1] sm:$0xff pattern:$0x75316420]
      %v271 = vld.sshfl [vmem:[#allocation1 + $0x8] sm:$0xff pattern:$0x75316420]
      %v272 = vld.sshfl [vmem:[#allocation1 + $0x10] sm:$0xff pattern:$0x75316420]
      %v274 = vsel %vm196, %v174, 0
      %v276 = vsel %vm200, %v270, 0
      %v278 = vsel %vm200, %v271, 0
      %v280 = vsel %vm200, %v272, 0
      %282 = vmatpush.msra.mxu0 0.0
      %283 = vmatpush.msra.mxu0 0.0
      %284 = vmatpush.msra.mxu0 0.0
      %285 = vmatpush.msra.mxu0 0.0
      %286 = vmatpush.msra.mxu0 0.0
      %287 = vmatpush.msra.mxu0 0.0
      %288 = vmatpush.msra.mxu0 0.0
      %289 = vmatpush.msra.mxu0 0.0
      %290 = vmatpush.msra.mxu0 0.0
      %291 = vmatpush.msra.mxu0 0.0
      %292 = vmatpush.msra.mxu0 0.0
      %293 = vmatpush.msra.mxu0 0.0
      %294 = vmatpush.msra.mxu0 0.0
      %295 = vmatpush.msra.mxu0 0.0
      %296 = vmatpush.msra.mxu0 0.0
      %297 = vmatpush.msra.mxu0 %v276
      %298 = vmatmul.f32.gmra.mxu0 %v274
      %v299 = vpop.f32.mrf.mxu0
      %v300 = vadd.f32 %v225, %v299
      %301 = vdwg.mxu0
      %302 = vmatpush.msra.mxu0 0.0
      %303 = vmatpush.msra.mxu0 0.0
      %304 = vmatpush.msra.mxu0 0.0
      %305 = vmatpush.msra.mxu0 0.0
      %306 = vmatpush.msra.mxu0 0.0
      %307 = vmatpush.msra.mxu0 0.0
      %308 = vmatpush.msra.mxu0 0.0
      %309 = vmatpush.msra.mxu0 0.0
      %310 = vmatpush.msra.mxu0 0.0
      %311 = vmatpush.msra.mxu0 0.0
      %312 = vmatpush.msra.mxu0 0.0
      %313 = vmatpush.msra.mxu0 0.0
      %314 = vmatpush.msra.mxu0 0.0
      %315 = vmatpush.msra.mxu0 0.0
      %316 = vmatpush.msra.mxu0 0.0
      %317 = vmatpush.msra.mxu0 %v278
      %318 = vmatmul.f32.gmra.mxu0 %v274
      %v319 = vpop.f32.mrf.mxu0
      %v320 = vadd.f32 %v245, %v319
      %321 = vdwg.mxu0
      %322 = vmatpush.msra.mxu0 0.0
      %323 = vmatpush.msra.mxu0 0.0
      %324 = vmatpush.msra.mxu0 0.0
      %325 = vmatpush.msra.mxu0 0.0
      %326 = vmatpush.msra.mxu0 0.0
      %327 = vmatpush.msra.mxu0 0.0
      %328 = vmatpush.msra.mxu0 0.0
      %329 = vmatpush.msra.mxu0 0.0
      %330 = vmatpush.msra.mxu0 0.0
      %331 = vmatpush.msra.mxu0 0.0
      %332 = vmatpush.msra.mxu0 0.0
      %333 = vmatpush.msra.mxu0 0.0
      %334 = vmatpush.msra.mxu0 0.0
      %335 = vmatpush.msra.mxu0 0.0
      %336 = vmatpush.msra.mxu0 0.0
      %337 = vmatpush.msra.mxu0 %v280
      %338 = vmatmul.f32.gmra.mxu0 %v274
      %v339 = vpop.f32.mrf.mxu0
      %v340 = vadd.f32 %v265, %v339
      %341 = vdwg.mxu0
      %s342 = scalar_lea.vmem %s0, 16
      %v343 = vld [vmem:[%s342] sm:$0xff]
      %v344 = vld [vmem:[%s166] sm:$0xff]
      %v345 = vld [vmem:[%s166 + $0x8] sm:$0xf]
      %348 = vst [vmem:[#allocation1] ss:$2 sm:$0xff] %v344
      %s349 = scalar_lea.vmem [#allocation1], 16
      %350 = vst [vmem:[%s349] ss:$2 sm:$0xff] %v345
      %v351 = vld.sshfl [vmem:[#allocation1] sm:$0xff pattern:$0x75316420]
      %v352 = vld.sshfl [vmem:[#allocation1 + $0x8] sm:$0xff pattern:$0x75316420]
      %v353 = vld.sshfl [vmem:[#allocation1 + $0x10] sm:$0xff pattern:$0x75316420]
      %354 = vrot.lane.b32.xlu0 %v351, 126
      %v355 = vpop.permute.xlu0 %354
      %356 = vrot.lane.b32.xlu0 %v352, 126
      %v357 = vpop.permute.xlu0 %356
      %358 = vrot.lane.b32.xlu0 %v353, 126
      %v359 = vpop.permute.xlu0 %358
      %vm360 = vcmask 1031168
      %v361 = vsel %vm360, %v355, %v357
      %v362 = vsel %vm360, %v357, %v359
      %v364 = vsel %vm196, %v343, 0
      %v366 = vsel %vm200, %v361, 0
      %v368 = vsel %vm200, %v362, 0
      %v370 = vsel %vm200, %v359, 0
      %372 = vmatpush.msra.mxu0 0.0
      %373 = vmatpush.msra.mxu0 0.0
      %374 = vmatpush.msra.mxu0 0.0
      %375 = vmatpush.msra.mxu0 0.0
      %376 = vmatpush.msra.mxu0 0.0
      %377 = vmatpush.msra.mxu0 0.0
      %378 = vmatpush.msra.mxu0 0.0
      %379 = vmatpush.msra.mxu0 0.0
      %380 = vmatpush.msra.mxu0 0.0
      %381 = vmatpush.msra.mxu0 0.0
      %382 = vmatpush.msra.mxu0 0.0
      %383 = vmatpush.msra.mxu0 0.0
      %384 = vmatpush.msra.mxu0 0.0
      %385 = vmatpush.msra.mxu0 0.0
      %386 = vmatpush.msra.mxu0 0.0
      %387 = vmatpush.msra.mxu0 %v366
      %388 = vmatmul.f32.gmra.mxu0 %v364
      %v389 = vpop.f32.mrf.mxu0
      %v390 = vadd.f32 0.0, %v389
      %391 = vdwg.mxu0
      %392 = vmatpush.msra.mxu0 0.0
      %393 = vmatpush.msra.mxu0 0.0
      %394 = vmatpush.msra.mxu0 0.0
      %395 = vmatpush.msra.mxu0 0.0
      %396 = vmatpush.msra.mxu0 0.0
      %397 = vmatpush.msra.mxu0 0.0
      %398 = vmatpush.msra.mxu0 0.0
      %399 = vmatpush.msra.mxu0 0.0
      %400 = vmatpush.msra.mxu0 0.0
      %401 = vmatpush.msra.mxu0 0.0
      %402 = vmatpush.msra.mxu0 0.0
      %403 = vmatpush.msra.mxu0 0.0
      %404 = vmatpush.msra.mxu0 0.0
      %405 = vmatpush.msra.mxu0 0.0
      %406 = vmatpush.msra.mxu0 0.0
      %407 = vmatpush.msra.mxu0 %v368
      %408 = vmatmul.f32.gmra.mxu0 %v364
      %v409 = vpop.f32.mrf.mxu0
      %v410 = vadd.f32 0.0, %v409
      %411 = vdwg.mxu0
      %412 = vmatpush.msra.mxu0 0.0
      %413 = vmatpush.msra.mxu0 0.0
      %414 = vmatpush.msra.mxu0 0.0
      %415 = vmatpush.msra.mxu0 0.0
      %416 = vmatpush.msra.mxu0 0.0
      %417 = vmatpush.msra.mxu0 0.0
      %418 = vmatpush.msra.mxu0 0.0
      %419 = vmatpush.msra.mxu0 0.0
      %420 = vmatpush.msra.mxu0 0.0
      %421 = vmatpush.msra.mxu0 0.0
      %422 = vmatpush.msra.mxu0 0.0
      %423 = vmatpush.msra.mxu0 0.0
      %424 = vmatpush.msra.mxu0 0.0
      %425 = vmatpush.msra.mxu0 0.0
      %426 = vmatpush.msra.mxu0 0.0
      %427 = vmatpush.msra.mxu0 %v370
      %428 = vmatmul.f32.gmra.mxu0 %v364
      %v429 = vpop.f32.mrf.mxu0
      %v430 = vadd.f32 0.0, %v429
      %431 = vdwg.mxu0
      %v432 = vadd.f32 %v300, %v390
      %v433 = vadd.f32 %v320, %v410
      %v434 = vadd.f32 %v340, %v430
      %s435 = scalar_lea.vmem %s0, 24
      %v436 = vld [vmem:[%s435] sm:$0xff]
      %v437 = vld [vmem:[%s166] sm:$0xff]
      %v438 = vld [vmem:[%s166 + $0x8] sm:$0xf]
      %441 = vst [vmem:[#allocation1] ss:$2 sm:$0xff] %v437
      %s442 = scalar_lea.vmem [#allocation1], 16
      %443 = vst [vmem:[%s442] ss:$2 sm:$0xff] %v438
      %v444 = vld.sshfl [vmem:[#allocation1] sm:$0xff pattern:$0x75316420]
      %v445 = vld.sshfl [vmem:[#allocation1 + $0x8] sm:$0xff pattern:$0x75316420]
      %v446 = vld.sshfl [vmem:[#allocation1 + $0x10] sm:$0xff pattern:$0x75316420]
      %447 = vrot.lane.b32.xlu0 %v444, 110
      %v448 = vpop.permute.xlu0 %447
      %449 = vrot.lane.b32.xlu0 %v445, 110
      %v450 = vpop.permute.xlu0 %449
      %451 = vrot.lane.b32.xlu0 %v446, 110
      %v452 = vpop.permute.xlu0 %451
      %vm453 = vcmask 900096
      %v454 = vsel %vm453, %v448, %v450
      %v455 = vsel %vm453, %v450, %v452
      %v457 = vsel %vm196, %v436, 0
      %v459 = vsel %vm200, %v454, 0
      %v461 = vsel %vm200, %v455, 0
      %v463 = vsel %vm200, %v452, 0
      %465 = vmatpush.msra.mxu0 0.0
      %466 = vmatpush.msra.mxu0 0.0
      %467 = vmatpush.msra.mxu0 0.0
      %468 = vmatpush.msra.mxu0 0.0
      %469 = vmatpush.msra.mxu0 0.0
      %470 = vmatpush.msra.mxu0 0.0
      %471 = vmatpush.msra.mxu0 0.0
      %472 = vmatpush.msra.mxu0 0.0
      %473 = vmatpush.msra.mxu0 0.0
      %474 = vmatpush.msra.mxu0 0.0
      %475 = vmatpush.msra.mxu0 0.0
      %476 = vmatpush.msra.mxu0 0.0
      %477 = vmatpush.msra.mxu0 0.0
      %478 = vmatpush.msra.mxu0 0.0
      %479 = vmatpush.msra.mxu0 0.0
      %480 = vmatpush.msra.mxu0 %v459
      %481 = vmatmul.f32.gmra.mxu0 %v457
      %v482 = vpop.f32.mrf.mxu0
      %v483 = vadd.f32 0.0, %v482
      %484 = vdwg.mxu0
      %485 = vmatpush.msra.mxu0 0.0
      %486 = vmatpush.msra.mxu0 0.0
      %487 = vmatpush.msra.mxu0 0.0
      %488 = vmatpush.msra.mxu0 0.0
      %489 = vmatpush.msra.mxu0 0.0
      %490 = vmatpush.msra.mxu0 0.0
      %491 = vmatpush.msra.mxu0 0.0
      %492 = vmatpush.msra.mxu0 0.0
      %493 = vmatpush.msra.mxu0 0.0
      %494 = vmatpush.msra.mxu0 0.0
      %495 = vmatpush.msra.mxu0 0.0
      %496 = vmatpush.msra.mxu0 0.0
      %497 = vmatpush.msra.mxu0 0.0
      %498 = vmatpush.msra.mxu0 0.0
      %499 = vmatpush.msra.mxu0 0.0
      %500 = vmatpush.msra.mxu0 %v461
      %501 = vmatmul.f32.gmra.mxu0 %v457
      %v502 = vpop.f32.mrf.mxu0
      %v503 = vadd.f32 0.0, %v502
      %504 = vdwg.mxu0
      %505 = vmatpush.msra.mxu0 0.0
      %506 = vmatpush.msra.mxu0 0.0
      %507 = vmatpush.msra.mxu0 0.0
      %508 = vmatpush.msra.mxu0 0.0
      %509 = vmatpush.msra.mxu0 0.0
      %510 = vmatpush.msra.mxu0 0.0
      %511 = vmatpush.msra.mxu0 0.0
      %512 = vmatpush.msra.mxu0 0.0
      %513 = vmatpush.msra.mxu0 0.0
      %514 = vmatpush.msra.mxu0 0.0
      %515 = vmatpush.msra.mxu0 0.0
      %516 = vmatpush.msra.mxu0 0.0
      %517 = vmatpush.msra.mxu0 0.0
      %518 = vmatpush.msra.mxu0 0.0
      %519 = vmatpush.msra.mxu0 0.0
      %520 = vmatpush.msra.mxu0 %v463
      %521 = vmatmul.f32.gmra.mxu0 %v457
      %v522 = vpop.f32.mrf.mxu0
      %v523 = vadd.f32 0.0, %v522
      %524 = vdwg.mxu0
      %v525 = vadd.f32 %v432, %v483
      %v526 = vadd.f32 %v433, %v503
      %v527 = vadd.f32 %v434, %v523
      %s528 = scalar_lea.vmem %s0, 32
      %v529 = vld [vmem:[%s528] sm:$0xff]
      %v530 = vld [vmem:[%s166] sm:$0xff]
      %v531 = vld [vmem:[%s166 + $0x8] sm:$0xf]
      %534 = vst [vmem:[#allocation1] ss:$2 sm:$0xff] %v530
      %s535 = scalar_lea.vmem [#allocation1], 16
      %536 = vst [vmem:[%s535] ss:$2 sm:$0xff] %v531
      %v537 = vld.sshfl [vmem:[#allocation1] sm:$0xff pattern:$0x75316420]
      %v538 = vld.sshfl [vmem:[#allocation1 + $0x8] sm:$0xff pattern:$0x75316420]
      %v539 = vld.sshfl [vmem:[#allocation1 + $0x10] sm:$0xff pattern:$0x75316420]
      %540 = vrot.lane.b32.xlu0 %v537, 109
      %v541 = vpop.permute.xlu0 %540
      %542 = vrot.lane.b32.xlu0 %v538, 109
      %v543 = vpop.permute.xlu0 %542
      %544 = vrot.lane.b32.xlu0 %v539, 109
      %v545 = vpop.permute.xlu0 %544
      %vm546 = vcmask 891904
      %v547 = vsel %vm546, %v541, %v543
      %v548 = vsel %vm546, %v543, %v545
      %v550 = vsel %vm196, %v529, 0
      %v552 = vsel %vm200, %v547, 0
      %v554 = vsel %vm200, %v548, 0
      %v556 = vsel %vm200, %v545, 0
      %558 = vmatpush.msra.mxu0 0.0
      %559 = vmatpush.msra.mxu0 0.0
      %560 = vmatpush.msra.mxu0 0.0
      %561 = vmatpush.msra.mxu0 0.0
      %562 = vmatpush.msra.mxu0 0.0
      %563 = vmatpush.msra.mxu0 0.0
      %564 = vmatpush.msra.mxu0 0.0
      %565 = vmatpush.msra.mxu0 0.0
      %566 = vmatpush.msra.mxu0 0.0
      %567 = vmatpush.msra.mxu0 0.0
      %568 = vmatpush.msra.mxu0 0.0
      %569 = vmatpush.msra.mxu0 0.0
      %570 = vmatpush.msra.mxu0 0.0
      %571 = vmatpush.msra.mxu0 0.0
      %572 = vmatpush.msra.mxu0 0.0
      %573 = vmatpush.msra.mxu0 %v552
      %574 = vmatmul.f32.gmra.mxu0 %v550
      %v575 = vpop.f32.mrf.mxu0
      %v576 = vadd.f32 0.0, %v575
      %577 = vdwg.mxu0
      %578 = vmatpush.msra.mxu0 0.0
      %579 = vmatpush.msra.mxu0 0.0
      %580 = vmatpush.msra.mxu0 0.0
      %581 = vmatpush.msra.mxu0 0.0
      %582 = vmatpush.msra.mxu0 0.0
      %583 = vmatpush.msra.mxu0 0.0
      %584 = vmatpush.msra.mxu0 0.0
      %585 = vmatpush.msra.mxu0 0.0
      %586 = vmatpush.msra.mxu0 0.0
      %587 = vmatpush.msra.mxu0 0.0
      %588 = vmatpush.msra.mxu0 0.0
      %589 = vmatpush.msra.mxu0 0.0
      %590 = vmatpush.msra.mxu0 0.0
      %591 = vmatpush.msra.mxu0 0.0
      %592 = vmatpush.msra.mxu0 0.0
      %593 = vmatpush.msra.mxu0 %v554
      %594 = vmatmul.f32.gmra.mxu0 %v550
      %v595 = vpop.f32.mrf.mxu0
      %v596 = vadd.f32 0.0, %v595
      %597 = vdwg.mxu0
      %598 = vmatpush.msra.mxu0 0.0
      %599 = vmatpush.msra.mxu0 0.0
      %600 = vmatpush.msra.mxu0 0.0
      %601 = vmatpush.msra.mxu0 0.0
      %602 = vmatpush.msra.mxu0 0.0
      %603 = vmatpush.msra.mxu0 0.0
      %604 = vmatpush.msra.mxu0 0.0
      %605 = vmatpush.msra.mxu0 0.0
      %606 = vmatpush.msra.mxu0 0.0
      %607 = vmatpush.msra.mxu0 0.0
      %608 = vmatpush.msra.mxu0 0.0
      %609 = vmatpush.msra.mxu0 0.0
      %610 = vmatpush.msra.mxu0 0.0
      %611 = vmatpush.msra.mxu0 0.0
      %612 = vmatpush.msra.mxu0 0.0
      %613 = vmatpush.msra.mxu0 %v556
      %614 = vmatmul.f32.gmra.mxu0 %v550
      %v615 = vpop.f32.mrf.mxu0
      %v616 = vadd.f32 0.0, %v615
      %617 = vdwg.mxu0
      %v618 = vadd.f32 %v525, %v576
      %v619 = vadd.f32 %v526, %v596
      %v620 = vadd.f32 %v527, %v616
      %s621 = scalar_lea.vmem %s0, 40
      %v622 = vld [vmem:[%s621] sm:$0xff]
      %v623 = vld [vmem:[%s166] sm:$0xff]
      %v624 = vld [vmem:[%s166 + $0x8] sm:$0xf]
      %627 = vst [vmem:[#allocation1] ss:$2 sm:$0xff] %v623
      %s628 = scalar_lea.vmem [#allocation1], 16
      %629 = vst [vmem:[%s628] ss:$2 sm:$0xff] %v624
      %v630 = vld.sshfl [vmem:[#allocation1] sm:$0xff pattern:$0x75316420]
      %v631 = vld.sshfl [vmem:[#allocation1 + $0x8] sm:$0xff pattern:$0x75316420]
      %v632 = vld.sshfl [vmem:[#allocation1 + $0x10] sm:$0xff pattern:$0x75316420]
      %633 = vrot.lane.b32.xlu0 %v630, 108
      %v634 = vpop.permute.xlu0 %633
      %635 = vrot.lane.b32.xlu0 %v631, 108
      %v636 = vpop.permute.xlu0 %635
      %637 = vrot.lane.b32.xlu0 %v632, 108
      %v638 = vpop.permute.xlu0 %637
      %vm639 = vcmask 883712
      %v640 = vsel %vm639, %v634, %v636
      %v641 = vsel %vm639, %v636, %v638
      %v643 = vsel %vm196, %v622, 0
      %v645 = vsel %vm200, %v640, 0
      %v647 = vsel %vm200, %v641, 0
      %v649 = vsel %vm200, %v638, 0
      %651 = vmatpush.msra.mxu0 0.0
      %652 = vmatpush.msra.mxu0 0.0
      %653 = vmatpush.msra.mxu0 0.0
      %654 = vmatpush.msra.mxu0 0.0
      %655 = vmatpush.msra.mxu0 0.0
      %656 = vmatpush.msra.mxu0 0.0
      %657 = vmatpush.msra.mxu0 0.0
      %658 = vmatpush.msra.mxu0 0.0
      %659 = vmatpush.msra.mxu0 0.0
      %660 = vmatpush.msra.mxu0 0.0
      %661 = vmatpush.msra.mxu0 0.0
      %662 = vmatpush.msra.mxu0 0.0
      %663 = vmatpush.msra.mxu0 0.0
      %664 = vmatpush.msra.mxu0 0.0
      %665 = vmatpush.msra.mxu0 0.0
      %666 = vmatpush.msra.mxu0 %v645
      %667 = vmatmul.f32.gmra.mxu0 %v643
      %v668 = vpop.f32.mrf.mxu0
      %v669 = vadd.f32 0.0, %v668
      %670 = vdwg.mxu0
      %671 = vmatpush.msra.mxu0 0.0
      %672 = vmatpush.msra.mxu0 0.0
      %673 = vmatpush.msra.mxu0 0.0
      %674 = vmatpush.msra.mxu0 0.0
      %675 = vmatpush.msra.mxu0 0.0
      %676 = vmatpush.msra.mxu0 0.0
      %677 = vmatpush.msra.mxu0 0.0
      %678 = vmatpush.msra.mxu0 0.0
      %679 = vmatpush.msra.mxu0 0.0
      %680 = vmatpush.msra.mxu0 0.0
      %681 = vmatpush.msra.mxu0 0.0
      %682 = vmatpush.msra.mxu0 0.0
      %683 = vmatpush.msra.mxu0 0.0
      %684 = vmatpush.msra.mxu0 0.0
      %685 = vmatpush.msra.mxu0 0.0
      %686 = vmatpush.msra.mxu0 %v647
      %687 = vmatmul.f32.gmra.mxu0 %v643
      %v688 = vpop.f32.mrf.mxu0
      %v689 = vadd.f32 0.0, %v688
      %690 = vdwg.mxu0
      %691 = vmatpush.msra.mxu0 0.0
      %692 = vmatpush.msra.mxu0 0.0
      %693 = vmatpush.msra.mxu0 0.0
      %694 = vmatpush.msra.mxu0 0.0
      %695 = vmatpush.msra.mxu0 0.0
      %696 = vmatpush.msra.mxu0 0.0
      %697 = vmatpush.msra.mxu0 0.0
      %698 = vmatpush.msra.mxu0 0.0
      %699 = vmatpush.msra.mxu0 0.0
      %700 = vmatpush.msra.mxu0 0.0
      %701 = vmatpush.msra.mxu0 0.0
      %702 = vmatpush.msra.mxu0 0.0
      %703 = vmatpush.msra.mxu0 0.0
      %704 = vmatpush.msra.mxu0 0.0
      %705 = vmatpush.msra.mxu0 0.0
      %706 = vmatpush.msra.mxu0 %v649
      %707 = vmatmul.f32.gmra.mxu0 %v643
      %v708 = vpop.f32.mrf.mxu0
      %v709 = vadd.f32 0.0, %v708
      %710 = vdwg.mxu0
      %v711 = vadd.f32 %v618, %v669
      %v712 = vadd.f32 %v619, %v689
      %v713 = vadd.f32 %v620, %v709
      %s714 = scalar_lea.vmem %s0, 48
      %v715 = vld [vmem:[%s714] sm:$0xff]
      %v716 = vld [vmem:[%s166] sm:$0xff]
      %v717 = vld [vmem:[%s166 + $0x8] sm:$0xf]
      %720 = vst [vmem:[#allocation1] ss:$2 sm:$0xff] %v716
      %s721 = scalar_lea.vmem [#allocation1], 16
      %722 = vst [vmem:[%s721] ss:$2 sm:$0xff] %v717
      %v723 = vld.sshfl [vmem:[#allocation1] sm:$0xff pattern:$0x75316420]
      %v724 = vld.sshfl [vmem:[#allocation1 + $0x8] sm:$0xff pattern:$0x75316420]
      %v725 = vld.sshfl [vmem:[#allocation1 + $0x10] sm:$0xff pattern:$0x75316420]
      %726 = vrot.lane.b32.xlu0 %v723, 92
      %v727 = vpop.permute.xlu0 %726
      %728 = vrot.lane.b32.xlu0 %v724, 92
      %v729 = vpop.permute.xlu0 %728
      %730 = vrot.lane.b32.xlu0 %v725, 92
      %v731 = vpop.permute.xlu0 %730
      %vm732 = vcmask 752640
      %v733 = vsel %vm732, %v727, %v729
      %v734 = vsel %vm732, %v729, %v731
      %v736 = vsel %vm196, %v715, 0
      %v738 = vsel %vm200, %v733, 0
      %v740 = vsel %vm200, %v734, 0
      %v742 = vsel %vm200, %v731, 0
      %744 = vmatpush.msra.mxu0 0.0
      %745 = vmatpush.msra.mxu0 0.0
      %746 = vmatpush.msra.mxu0 0.0
      %747 = vmatpush.msra.mxu0 0.0
      %748 = vmatpush.msra.mxu0 0.0
      %749 = vmatpush.msra.mxu0 0.0
      %750 = vmatpush.msra.mxu0 0.0
      %751 = vmatpush.msra.mxu0 0.0
      %752 = vmatpush.msra.mxu0 0.0
      %753 = vmatpush.msra.mxu0 0.0
      %754 = vmatpush.msra.mxu0 0.0
      %755 = vmatpush.msra.mxu0 0.0
      %756 = vmatpush.msra.mxu0 0.0
      %757 = vmatpush.msra.mxu0 0.0
      %758 = vmatpush.msra.mxu0 0.0
      %759 = vmatpush.msra.mxu0 %v738
      %760 = vmatmul.f32.gmra.mxu0 %v736
      %v761 = vpop.f32.mrf.mxu0
      %v762 = vadd.f32 0.0, %v761
      %763 = vdwg.mxu0
      %764 = vmatpush.msra.mxu0 0.0
      %765 = vmatpush.msra.mxu0 0.0
      %766 = vmatpush.msra.mxu0 0.0
      %767 = vmatpush.msra.mxu0 0.0
      %768 = vmatpush.msra.mxu0 0.0
      %769 = vmatpush.msra.mxu0 0.0
      %770 = vmatpush.msra.mxu0 0.0
      %771 = vmatpush.msra.mxu0 0.0
      %772 = vmatpush.msra.mxu0 0.0
      %773 = vmatpush.msra.mxu0 0.0
      %774 = vmatpush.msra.mxu0 0.0
      %775 = vmatpush.msra.mxu0 0.0
      %776 = vmatpush.msra.mxu0 0.0
      %777 = vmatpush.msra.mxu0 0.0
      %778 = vmatpush.msra.mxu0 0.0
      %779 = vmatpush.msra.mxu0 %v740
      %780 = vmatmul.f32.gmra.mxu0 %v736
      %v781 = vpop.f32.mrf.mxu0
      %v782 = vadd.f32 0.0, %v781
      %783 = vdwg.mxu0
      %784 = vmatpush.msra.mxu0 0.0
      %785 = vmatpush.msra.mxu0 0.0
      %786 = vmatpush.msra.mxu0 0.0
      %787 = vmatpush.msra.mxu0 0.0
      %788 = vmatpush.msra.mxu0 0.0
      %789 = vmatpush.msra.mxu0 0.0
      %790 = vmatpush.msra.mxu0 0.0
      %791 = vmatpush.msra.mxu0 0.0
      %792 = vmatpush.msra.mxu0 0.0
      %793 = vmatpush.msra.mxu0 0.0
      %794 = vmatpush.msra.mxu0 0.0
      %795 = vmatpush.msra.mxu0 0.0
      %796 = vmatpush.msra.mxu0 0.0
      %797 = vmatpush.msra.mxu0 0.0
      %798 = vmatpush.msra.mxu0 0.0
      %799 = vmatpush.msra.mxu0 %v742
      %800 = vmatmul.f32.gmra.mxu0 %v736
      %v801 = vpop.f32.mrf.mxu0
      %v802 = vadd.f32 0.0, %v801
      %803 = vdwg.mxu0
      %v804 = vadd.f32 %v711, %v762
      %v805 = vadd.f32 %v712, %v782
      %v806 = vadd.f32 %v713, %v802
      %s807 = scalar_lea.vmem %s0, 56
      %v808 = vld [vmem:[%s807] sm:$0xff]
      %v809 = vld [vmem:[%s166] sm:$0xff]
      %v810 = vld [vmem:[%s166 + $0x8] sm:$0xf]
      %813 = vst [vmem:[#allocation1] ss:$2 sm:$0xff] %v809
      %s814 = scalar_lea.vmem [#allocation1], 16
      %815 = vst [vmem:[%s814] ss:$2 sm:$0xff] %v810
      %v816 = vld.sshfl [vmem:[#allocation1] sm:$0xff pattern:$0x75316420]
      %v817 = vld.sshfl [vmem:[#allocation1 + $0x8] sm:$0xff pattern:$0x75316420]
      %v818 = vld.sshfl [vmem:[#allocation1 + $0x10] sm:$0xff pattern:$0x75316420]
      %819 = vrot.lane.b32.xlu0 %v816, 91
      %v820 = vpop.permute.xlu0 %819
      %821 = vrot.lane.b32.xlu0 %v817, 91
      %v822 = vpop.permute.xlu0 %821
      %823 = vrot.lane.b32.xlu0 %v818, 91
      %v824 = vpop.permute.xlu0 %823
      %vm825 = vcmask 744448
      %v826 = vsel %vm825, %v820, %v822
      %v827 = vsel %vm825, %v822, %v824
      %v829 = vsel %vm196, %v808, 0
      %v831 = vsel %vm200, %v826, 0
      %v833 = vsel %vm200, %v827, 0
      %v835 = vsel %vm200, %v824, 0
      %837 = vmatpush.msra.mxu0 0.0
      %838 = vmatpush.msra.mxu0 0.0
      %839 = vmatpush.msra.mxu0 0.0
      %840 = vmatpush.msra.mxu0 0.0
      %841 = vmatpush.msra.mxu0 0.0
      %842 = vmatpush.msra.mxu0 0.0
      %843 = vmatpush.msra.mxu0 0.0
      %844 = vmatpush.msra.mxu0 0.0
      %845 = vmatpush.msra.mxu0 0.0
      %846 = vmatpush.msra.mxu0 0.0
      %847 = vmatpush.msra.mxu0 0.0
      %848 = vmatpush.msra.mxu0 0.0
      %849 = vmatpush.msra.mxu0 0.0
      %850 = vmatpush.msra.mxu0 0.0
      %851 = vmatpush.msra.mxu0 0.0
      %852 = vmatpush.msra.mxu0 %v831
      %853 = vmatmul.f32.gmra.mxu0 %v829
      %v854 = vpop.f32.mrf.mxu0
      %v855 = vadd.f32 0.0, %v854
      %856 = vdwg.mxu0
      %857 = vmatpush.msra.mxu0 0.0
      %858 = vmatpush.msra.mxu0 0.0
      %859 = vmatpush.msra.mxu0 0.0
      %860 = vmatpush.msra.mxu0 0.0
      %861 = vmatpush.msra.mxu0 0.0
      %862 = vmatpush.msra.mxu0 0.0
      %863 = vmatpush.msra.mxu0 0.0
      %864 = vmatpush.msra.mxu0 0.0
      %865 = vmatpush.msra.mxu0 0.0
      %866 = vmatpush.msra.mxu0 0.0
      %867 = vmatpush.msra.mxu0 0.0
      %868 = vmatpush.msra.mxu0 0.0
      %869 = vmatpush.msra.mxu0 0.0
      %870 = vmatpush.msra.mxu0 0.0
      %871 = vmatpush.msra.mxu0 0.0
      %872 = vmatpush.msra.mxu0 %v833
      %873 = vmatmul.f32.gmra.mxu0 %v829
      %v874 = vpop.f32.mrf.mxu0
      %v875 = vadd.f32 0.0, %v874
      %876 = vdwg.mxu0
      %877 = vmatpush.msra.mxu0 0.0
      %878 = vmatpush.msra.mxu0 0.0
      %879 = vmatpush.msra.mxu0 0.0
      %880 = vmatpush.msra.mxu0 0.0
      %881 = vmatpush.msra.mxu0 0.0
      %882 = vmatpush.msra.mxu0 0.0
      %883 = vmatpush.msra.mxu0 0.0
      %884 = vmatpush.msra.mxu0 0.0
      %885 = vmatpush.msra.mxu0 0.0
      %886 = vmatpush.msra.mxu0 0.0
      %887 = vmatpush.msra.mxu0 0.0
      %888 = vmatpush.msra.mxu0 0.0
      %889 = vmatpush.msra.mxu0 0.0
      %890 = vmatpush.msra.mxu0 0.0
      %891 = vmatpush.msra.mxu0 0.0
      %892 = vmatpush.msra.mxu0 %v835
      %893 = vmatmul.f32.gmra.mxu0 %v829
      %v894 = vpop.f32.mrf.mxu0
      %v895 = vadd.f32 0.0, %v894
      %896 = vdwg.mxu0
      %v897 = vadd.f32 %v804, %v855
      %v898 = vadd.f32 %v805, %v875
      %v899 = vadd.f32 %v806, %v895
      %s900 = scalar_lea.vmem %s0, 64
      %v901 = vld [vmem:[%s900] sm:$0xff]
      %v902 = vld [vmem:[%s166] sm:$0xff]
      %v903 = vld [vmem:[%s166 + $0x8] sm:$0xf]
      %906 = vst [vmem:[#allocation1] ss:$2 sm:$0xff] %v902
      %s907 = scalar_lea.vmem [#allocation1], 16
      %908 = vst [vmem:[%s907] ss:$2 sm:$0xff] %v903
      %v909 = vld.sshfl [vmem:[#allocation1] sm:$0xff pattern:$0x75316420]
      %v910 = vld.sshfl [vmem:[#allocation1 + $0x8] sm:$0xff pattern:$0x75316420]
      %v911 = vld.sshfl [vmem:[#allocation1 + $0x10] sm:$0xff pattern:$0x75316420]
      %912 = vrot.lane.b32.xlu0 %v909, 90
      %v913 = vpop.permute.xlu0 %912
      %914 = vrot.lane.b32.xlu0 %v910, 90
      %v915 = vpop.permute.xlu0 %914
      %916 = vrot.lane.b32.xlu0 %v911, 90
      %v917 = vpop.permute.xlu0 %916
      %vm918 = vcmask 736256
      %v919 = vsel %vm918, %v913, %v915
      %v920 = vsel %vm918, %v915, %v917
      %v922 = vsel %vm196, %v901, 0
      %v924 = vsel %vm200, %v919, 0
      %v926 = vsel %vm200, %v920, 0
      %v928 = vsel %vm200, %v917, 0
      %930 = vmatpush.msra.mxu0 0.0
      %931 = vmatpush.msra.mxu0 0.0
      %932 = vmatpush.msra.mxu0 0.0
      %933 = vmatpush.msra.mxu0 0.0
      %934 = vmatpush.msra.mxu0 0.0
      %935 = vmatpush.msra.mxu0 0.0
      %936 = vmatpush.msra.mxu0 0.0
      %937 = vmatpush.msra.mxu0 0.0
      %938 = vmatpush.msra.mxu0 0.0
      %939 = vmatpush.msra.mxu0 0.0
      %940 = vmatpush.msra.mxu0 0.0
      %941 = vmatpush.msra.mxu0 0.0
      %942 = vmatpush.msra.mxu0 0.0
      %943 = vmatpush.msra.mxu0 0.0
      %944 = vmatpush.msra.mxu0 0.0
      %945 = vmatpush.msra.mxu0 %v924
      %946 = vmatmul.f32.gmra.mxu0 %v922
      %v947 = vpop.f32.mrf.mxu0
      %v948 = vadd.f32 0.0, %v947
      %949 = vdwg.mxu0
      %950 = vmatpush.msra.mxu0 0.0
      %951 = vmatpush.msra.mxu0 0.0
      %952 = vmatpush.msra.mxu0 0.0
      %953 = vmatpush.msra.mxu0 0.0
      %954 = vmatpush.msra.mxu0 0.0
      %955 = vmatpush.msra.mxu0 0.0
      %956 = vmatpush.msra.mxu0 0.0
      %957 = vmatpush.msra.mxu0 0.0
      %958 = vmatpush.msra.mxu0 0.0
      %959 = vmatpush.msra.mxu0 0.0
      %960 = vmatpush.msra.mxu0 0.0
      %961 = vmatpush.msra.mxu0 0.0
      %962 = vmatpush.msra.mxu0 0.0
      %963 = vmatpush.msra.mxu0 0.0
      %964 = vmatpush.msra.mxu0 0.0
      %965 = vmatpush.msra.mxu0 %v926
      %966 = vmatmul.f32.gmra.mxu0 %v922
      %v967 = vpop.f32.mrf.mxu0
      %v968 = vadd.f32 0.0, %v967
      %969 = vdwg.mxu0
      %970 = vmatpush.msra.mxu0 0.0
      %971 = vmatpush.msra.mxu0 0.0
      %972 = vmatpush.msra.mxu0 0.0
      %973 = vmatpush.msra.mxu0 0.0
      %974 = vmatpush.msra.mxu0 0.0
      %975 = vmatpush.msra.mxu0 0.0
      %976 = vmatpush.msra.mxu0 0.0
      %977 = vmatpush.msra.mxu0 0.0
      %978 = vmatpush.msra.mxu0 0.0
      %979 = vmatpush.msra.mxu0 0.0
      %980 = vmatpush.msra.mxu0 0.0
      %981 = vmatpush.msra.mxu0 0.0
      %982 = vmatpush.msra.mxu0 0.0
      %983 = vmatpush.msra.mxu0 0.0
      %984 = vmatpush.msra.mxu0 0.0
      %985 = vmatpush.msra.mxu0 %v928
      %986 = vmatmul.f32.gmra.mxu0 %v922
      %v987 = vpop.f32.mrf.mxu0
      %v988 = vadd.f32 0.0, %v987
      %989 = vdwg.mxu0
      %v990 = vadd.f32 %v897, %v948
      %v991 = vadd.f32 %v898, %v968
      %v992 = vadd.f32 %v899, %v988
      %v993 = vld [vmem:[%s1] sm:$0xff]
      %995 = vset.pattern.permute.xlu0 0
      %996 = vperm.xlu0 %995, %v993
      %v997 = vpop.permute.xlu0 %996
      %v999 = vadd.f32 %v990, %v997
      %v1000 = vadd.f32 %v991, %v997
      %v1001 = vadd.f32 %v992, %v997
      %1002 = vst [vmem:[%s172] sm:$0xff] %v999
      %1003 = vst [vmem:[%s172 + $0x8] sm:$0xff] %v1000
      %1004 = vst.msk [vmem:[%s172 + $0x10] sm:$0xff] %vm918, %v1001
      %vm1005 = vcmask 1048272
      %1006 = vst.msk [vmem:[%s172 + $0x10] sm:$0xff] %vm1005, %v997
      %s1007 = smul.u32 3, %s14
      %p1008 = scmp.lt.s32.totalorder %s1007, 5
      %s1009 = scalar_select %p1008, %s1007, 5
      %s1010 = smul.addr %s1009, 8
      %s1011 = scalar_lea.vmem %s3, %s1010
      // Predicated region
      $region33: #{trans_layer_rule6.1} parent=31 // pred_check
        %p1012 = pneg %p100
      $region34: #{trans_layer_rule6.1} parent=31 // pred_check_branch
        %1014 = sbr.rel (%p1012) target = $region36
      $region35: #{trans_layer_rule6.1} parent=31 // pred_region
        %s1015 = smul.u32 3, %s14
      $region36: #{trans_layer_rule6.1} parent=31 // pred_fallthru
        _
    $region32: #{trans_layer_rule6.1} parent=5 // pred_fallthru
      _
    %p1016 = scmp.le.s32.totalorder 2, %s9
    // Predicated region
    $region37: #{trans_layer_rule6.1} parent=5 // pred_check
      %p1017 = pneg %p1016
    $region38: #{trans_layer_rule6.1} parent=5 // pred_check_branch
      %1019 = sbr.rel (%p1017) target = $region40
    $region39: #{trans_layer_rule6.1} parent=5 // pred_region
      %s1020 = ssub.s32 %s9, 2
      // Predicated region
      $region41: #{trans_layer_rule6.1} parent=39 // pred_check
        %p1021 = pneg %p106
      $region42: #{trans_layer_rule6.1} parent=39 // pred_check_branch
        %1023 = sbr.rel (%p1021) target = $region44
      $region43: #{trans_layer_rule6.1} parent=39 // pred_region
        %s1024 = smul.u32 3, %s15
        %p1025 = scmp.lt.s32.totalorder %s1024, 5
        %s1026 = scalar_select %p1025, %s1024, 5
        %s1027 = smul.addr %s1026, 8
        %s1028 = scalar_lea.vmem %s3, %s1027
      $region44: #{trans_layer_rule6.1} parent=39 // pred_fallthru
        _
    $region40: #{trans_layer_rule6.1} parent=5 // pred_fallthru
      _
  $region6: #{trans_layer_rule6.1} parent=0 // loop_footer
    %s13 = sadd.s32 1, %s9
  $region7: #{trans_layer_rule6.1} parent=0 // loop_footer_branch
    %8 = sbr.rel target = $region3
  $region8: #{trans_layer_rule6.1} parent=0 // loop_exit
    _

</llo_original>
